<compile_context>
chip_gen: v6e
topology: v6e:2x2x1
jax: 0.10.0
libtpu: 0.0.40
codegen_flags: <defaults>
</compile_context>

<pallas_src>
import functools

import jax
import jax.numpy as jnp
from jax.experimental import pallas as pl
from jax.experimental.pallas import tpu as pltpu


# ---------------------------------------------------------------------------
# Per-generation VMEM / tile budgets
# ---------------------------------------------------------------------------
@functools.lru_cache(maxsize=1)
def _tpu_vmem_budgets():
    """Returns (vmem_limit_bytes, per_tile_budget_bytes) sized per TPU gen."""
    phys = 128 * 1024 * 1024                       # v5e / v6e physical VMEM
    try:
        info = pltpu.get_tpu_info()
        phys = int(getattr(info, "vmem_capacity_bytes", phys))
    except Exception:
        pass
    # 64 MiB scoped limit on 128-MiB parts (v5e/v6e); ~48 MiB on v7x (64 MiB).
    vmem_limit = int(min(64 * 1024 * 1024, (phys * 3) // 4))
    # ~5.3 MiB/tile on v5e/v6e, 4 MiB/tile on v7x: 3 streams x 2 buffers fits.
    per_tile = int(max(2 * 1024 * 1024, vmem_limit // 12))
    return vmem_limit, per_tile


# ---------------------------------------------------------------------------
# Kernel 1: attention2d  (avgpool -> fc1 -> relu -> fc2 -> softmax)
# ---------------------------------------------------------------------------
def _attention2d_kernel(x_ref, w1_ref, b1_ref, w2_ref, b2_ref, o_ref, acc_ref,
                        *, hw_total, hw_tile, needs_mask):
    # x_ref:  (1, C, hw_tile) tile of the activation (native dtype)
    # w1_ref: (C, K)  fc1 weight, pre-transposed, pre-scaled by 1/(H*W)
    # b1_ref: (1, K); w2_ref: (K, K) pre-transposed; b2_ref: (1, K)
    # o_ref:  (1, 1, K) softmax output for this batch element
    # acc_ref:(1, C)  f32 running SUM over H*W (VMEM scratch)
    h_idx = pl.program_id(1)
    last = pl.num_programs(1) - 1

    @pl.when(h_idx == 0)
    def _init():
        acc_ref[...] = jnp.zeros_like(acc_ref)

    x = x_ref[...].astype(jnp.float32)                      # (1, C, TL)

    if needs_mask:
        # Only the final HW tile is ragged: keep the compare+select off the
        # steady-state accumulation path.
        @pl.when(h_idx != last)
        def _full_tile():
            acc_ref[...] += jnp.sum(x, axis=-1)

        @pl.when(h_idx == last)
        def _ragged_tile():
            col = h_idx * hw_tile + jax.lax.broadcasted_iota(
                jnp.int32, x.shape, 2)
            acc_ref[...] += jnp.sum(jnp.where(col < hw_total, x, 0.0), axis=-1)
    else:
        acc_ref[...] += jnp.sum(x, axis=-1)

    @pl.when(h_idx == last)
    def _finalize():
        pooled_sum = acc_ref[...]                           # mean folded into w1
        h1 = jnp.dot(pooled_sum, w1_ref[...],
                     preferred_element_type=jnp.float32) + b1_ref[...]
        h1 = jnp.maximum(h1, 0.0)                           # relu
        logits = jnp.dot(h1, w2_ref[...],
                         preferred_element_type=jnp.float32) + b2_ref[...]
        m = jnp.max(logits, axis=-1, keepdims=True)         # stable softmax
        e = jnp.exp(logits - m)
        sm = e / jnp.sum(e, axis=-1, keepdims=True)
        o_ref[...] = sm[None].astype(o_ref.dtype)           # (1, 1, K)


def _pick_hw_tile(C, HW, elt_bytes, budget_bytes):
    """Largest lane-aligned HW tile keeping one x tile under the budget."""
    if HW <= 128:
        return HW                                   # full dim always allowed
    lane_budget = max(128, ((budget_bytes // max(1, C * elt_bytes)) // 128) * 128)
    full_lanes = (HW // 128) * 128                  # largest multiple of 128 <= HW
    return int(min(lane_budget, full_lanes))


def attention2d_pallas(x_nchw, w1, b1, w2, b2, *, hw_tile=None):
    """x_nchw: (B, C, H, W); w1: (K, C); b1: (K,); w2: (K, K); b2: (K,) -> (B, K)."""
    B, C, H, W = x_nchw.shape
    K = w1.shape[0]
    HW = H * W
    x3 = x_nchw.reshape(B, C, HW)                   # native dtype, no extra pass
    elt = jnp.dtype(x3.dtype).itemsize

    vmem_limit, per_tile = _tpu_vmem_budgets()
    if hw_tile is None:
        hw_tile = _pick_hw_tile(C, HW, elt, per_tile)
    hw_tile = int(min(hw_tile, HW))
    n_hw = pl.cdiv(HW, hw_tile)
    needs_mask = (HW % hw_tile) != 0

    # Fold the average-pool divisor into fc1's weight; pre-transpose both
    # weights so the kernel never transposes in-kernel.
    w1t = (w1.T / float(HW)).astype(jnp.float32)    # (C, K)
    w2t = w2.T.astype(jnp.float32)                  # (K, K)
    b1r = b1.reshape(1, K).astype(jnp.float32)
    b2r = b2.reshape(1, K).astype(jnp.float32)

    kernel = functools.partial(_attention2d_kernel, hw_total=HW,
                               hw_tile=hw_tile, needs_mask=needs_mask)

    flops = int(2 * B * C * HW + 2 * B * C * K + 2 * B * K * K)
    bytes_accessed = int(x3.size * elt
                         + (w1t.size + w2t.size + b1r.size + b2r.size) * 4
                         + B * K * 4)

    grid_spec = pltpu.PrefetchScalarGridSpec(
        num_scalar_prefetch=0,
        grid=(B, n_hw),                             # HW (reduction) axis last
        in_specs=[
            pl.BlockSpec((1, C, hw_tile), lambda b, h: (b, 0, h)),
            pl.BlockSpec((C, K), lambda b, h: (0, 0)),
            pl.BlockSpec((1, K), lambda b, h: (0, 0)),
            pl.BlockSpec((K, K), lambda b, h: (0, 0)),
            pl.BlockSpec((1, K), lambda b, h: (0, 0)),
        ],
        # output block index constant across the HW axis -> accumulator pattern
        out_specs=pl.BlockSpec((1, 1, K), lambda b, h: (b, 0, 0)),
        scratch_shapes=[pltpu.VMEM((1, C), jnp.float32)],
    )

    out = pl.pallas_call(
        kernel,
        out_shape=jax.ShapeDtypeStruct((B, 1, K), jnp.float32),
        grid_spec=grid_spec,
        compiler_params=pltpu.CompilerParams(
            dimension_semantics=("parallel", "arbitrary"),
            vmem_limit_bytes=vmem_limit,
        ),
        cost_estimate=pl.CostEstimate(flops=flops, transcendentals=int(B * K),
                                      bytes_accessed=bytes_accessed),
    )(x3, w1t, b1r, w2t, b2r)
    return out.reshape(B, K)


def attention2d_ref(x_nchw, w1, b1, w2, b2):
    """Pure-JAX reference mirroring the PyTorch attention2d module."""
    pooled = jnp.mean(x_nchw, axis=(2, 3))
    h = jnp.maximum(pooled @ w1.T + b1, 0.0)
    return jax.nn.softmax(h @ w2.T + b2, axis=1)


# ---------------------------------------------------------------------------
# Kernel 2: fused BN(residual) + BN(shortcut) + add + ReLU, lane-dense
# ---------------------------------------------------------------------------
def _bn_add_relu_kernel(a_ref, b_ref, sa_ref, ta_ref, sb_ref, tb_ref, o_ref):
    # a/b: (tm, tn) activation tiles; sa/ta/sb/tb: (1, tn) per-channel scale /
    # shift already expanded to lane layout (broadcast over the row axis).
    a = a_ref[...].astype(jnp.float32)
    b = b_ref[...].astype(jnp.float32)
    y = (a * sa_ref[...] + ta_ref[...]) + (b * sb_ref[...] + tb_ref[...])
    o_ref[...] = jnp.maximum(y, 0.0).astype(o_ref.dtype)


def bn_add_relu_pallas(a, b, scale_a, shift_a, scale_b, shift_b):
    """relu( (a*scale_a+shift_a) + (b*scale_b+shift_b) ) for NCHW tensors.

    a, b: (B, C, H, W); scale/shift: (C,) f32.  The activation is flattened to
    (B, C*H*W) so the lane dim is a large multiple of 128 (unmasked stores).
    """
    B, C, H, W = a.shape
    HW = H * W
    N = C * HW
    out_dtype = jnp.result_type(a.dtype, b.dtype)
    a2 = a.reshape(B, N)
    b2 = b.reshape(B, N)

    def expand(v):  # (C,) -> (1, C*HW) matching the row-major NCHW flatten
        return jnp.repeat(v.astype(jnp.float32), HW).reshape(1, N)

    sa2, ta2 = expand(scale_a), expand(shift_a)
    sb2, tb2 = expand(scale_b), expand(shift_b)

    elt = jnp.dtype(a2.dtype).itemsize
    vmem_limit, per_tile = _tpu_vmem_budgets()

    # Row tile: full batch when small, else 8-row slabs (sublane aligned).
    tm = B if B <= 8 else 8
    # Lane tile: biggest 128-multiple under the per-generation byte budget.
    if N % 128 == 0:
        tn = int(min(N, max(128, (per_tile // max(1, tm * elt)) // 128 * 128)))
    else:
        tn = N                                   # full-dim block (rare shapes)

    grid = (pl.cdiv(B, tm), pl.cdiv(N, tn))
    blk = lambda i, j: (i, j)
    vec = lambda i, j: (0, j)

    flops = int(6 * B * N)
    bytes_accessed = int(2 * B * N * elt
                         + B * N * jnp.dtype(out_dtype).itemsize
                         + 4 * N * 4)

    out = pl.pallas_call(
        _bn_add_relu_kernel,
        out_shape=jax.ShapeDtypeStruct((B, N), out_dtype),
        grid=grid,
        in_specs=[pl.BlockSpec((tm, tn), blk),
                  pl.BlockSpec((tm, tn), blk),
                  pl.BlockSpec((1, tn), vec),
                  pl.BlockSpec((1, tn), vec),
                  pl.BlockSpec((1, tn), vec),
                  pl.BlockSpec((1, tn), vec)],
        out_specs=pl.BlockSpec((tm, tn), blk),
        compiler_params=pltpu.CompilerParams(
            dimension_semantics=("parallel", "parallel"),
            vmem_limit_bytes=vmem_limit,
        ),
        cost_estimate=pl.CostEstimate(flops=flops, transcendentals=0,
                                      bytes_accessed=bytes_accessed),
    )(a2, b2, sa2, ta2, sb2, tb2)
    return out.reshape(B, C, H, W)


# ---------------------------------------------------------------------------
# Dynamic_conv2d / BatchNorm / BasicBlock forward (plain JAX glue)
# ---------------------------------------------------------------------------
def dynamic_conv2d(x, attn_params, weight, *, stride=1, padding=0, dilation=1,
                   groups=1, use_pallas_attn=True):
    """weight: (K, out, in//groups, kh, kw); per-sample aggregated conv.

    Uses a single grouped conv with feature_group_count = B*groups (PyTorch's
    groups=B trick) instead of B sequential per-sample convs.
    """
    w1, b1, w2, b2 = attn_params
    if use_pallas_attn:
        attn = attention2d_pallas(x, w1, b1, w2, b2)          # (B, K)
    else:
        attn = attention2d_ref(x, w1, b1, w2, b2)

    B, Cin, H, W = x.shape
    K, Cout, Cin_g, kh, kw = weight.shape
    agg_w = (attn @ weight.reshape(K, -1)).reshape(B * Cout, Cin_g, kh, kw)

    y = jax.lax.conv_general_dilated(
        x.reshape(1, B * Cin, H, W), agg_w,
        window_strides=(stride, stride),
        padding=[(padding, padding), (padding, padding)],
        rhs_dilation=(dilation, dilation),
        dimension_numbers=("NCHW", "OIHW", "NCHW"),
        feature_group_count=B * groups)
    return y.reshape(B, Cout, y.shape[-2], y.shape[-1])


def _bn_scale_shift(bn_params, eps=1e-5):
    gamma, beta, mean, var = bn_params
    scale = gamma * jax.lax.rsqrt(var + eps)
    shift = beta - mean * scale
    return scale, shift


def batchnorm2d_infer(x, bn_params, eps=1e-5):
    scale, shift = _bn_scale_shift(bn_params, eps)
    return x * scale[None, :, None, None] + shift[None, :, None, None]


def basic_block_forward(x, params, *, stride, use_pallas=True):
    out = dynamic_conv2d(x, params["dyn1_attn"], params["dyn1_w"],
                         stride=stride, padding=1, use_pallas_attn=use_pallas)
    out = batchnorm2d_infer(out, params["bn1"])
    out = jnp.maximum(out, 0.0)
    out = dynamic_conv2d(out, params["dyn2_attn"], params["dyn2_w"],
                         stride=1, padding=1, use_pallas_attn=use_pallas)

    has_short = "short_w" in params
    if has_short:
        sc = dynamic_conv2d(x, params["short_attn"], params["short_w"],
                            stride=stride, padding=0, use_pallas_attn=use_pallas)
    else:
        sc = x

    if use_pallas:
        # bn2 (residual) and bn_s (shortcut) fused into the add+ReLU kernel.
        sa, ta = _bn_scale_shift(params["bn2"])
        if has_short:
            sb, tb = _bn_scale_shift(params["bn_s"])
        else:
            C = out.shape[1]
            sb = jnp.ones((C,), jnp.float32)
            tb = jnp.zeros((C,), jnp.float32)
        return bn_add_relu_pallas(out, sc, sa, ta, sb, tb)

    # pure-JAX reference path
    out = batchnorm2d_infer(out, params["bn2"])
    if has_short:
        sc = batchnorm2d_infer(sc, params["bn_s"])
    return jnp.maximum(out + sc, 0.0)


# ---------------------------------------------------------------------------
# Deterministic parameter construction + self-test
# ---------------------------------------------------------------------------
def make_attn_params(key, in_planes, K):
    k1, k2, k3, k4 = jax.random.split(key, 4)
    return (0.3 * jax.random.normal(k1, (K, in_planes), jnp.float32),
            0.1 * jax.random.normal(k2, (K,), jnp.float32),
            0.3 * jax.random.normal(k3, (K, K), jnp.float32),
            0.1 * jax.random.normal(k4, (K,), jnp.float32))


def make_bn_params(key, C):
    k1, k2, k3, k4 = jax.random.split(key, 4)
    return (1.0 + 0.1 * jax.random.normal(k1, (C,), jnp.float32),
            0.1 * jax.random.normal(k2, (C,), jnp.float32),
            0.1 * jax.random.normal(k3, (C,), jnp.float32),
            1.0 + 0.1 * jnp.abs(jax.random.normal(k4, (C,), jnp.float32)))


if __name__ == "__main__":
    B, Cin, Cout, H, W, K = 2, 4, 8, 16, 16, 4
    stride = 2                                   # exercises the shortcut branch

    keys = jax.random.split(jax.random.PRNGKey(0), 12)
    x = jax.random.normal(keys[0], (B, Cin, H, W), jnp.float32)

    params = {
        "dyn1_attn": make_attn_params(keys[1], Cin, K),
        "dyn1_w": jax.random.normal(keys[2], (K, Cout, Cin, 3, 3), jnp.float32)
                  / (Cin * 9) ** 0.5,
        "bn1": make_bn_params(keys[3], Cout),
        "dyn2_attn": make_attn_params(keys[4], Cout, K),
        "dyn2_w": jax.random.normal(keys[5], (K, Cout, Cout, 3, 3), jnp.float32)
                  / (Cout * 9) ** 0.5,
        "bn2": make_bn_params(keys[6], Cout),
        "short_attn": make_attn_params(keys[7], Cin, K),
        "short_w": jax.random.normal(keys[8], (K, Cout, Cin, 1, 1), jnp.float32)
                   / Cin ** 0.5,
        "bn_s": make_bn_params(keys[9], Cout),
    }

    # --- standalone checks of the attention2d Pallas kernel ------------------
    w1, b1, w2, b2 = params["dyn1_attn"]
    # multi-tile HW accumulation path: 16*16 = 256 -> two 128-lane tiles
    a_pal = jax.block_until_ready(attention2d_pallas(x, w1, b1, w2, b2, hw_tile=128))
    a_ref = attention2d_ref(x, w1, b1, w2, b2)
    assert jnp.allclose(a_pal, a_ref, atol=1e-5, rtol=1e-5), "attention mismatch"
    assert jnp.allclose(jnp.sum(a_pal, axis=1), 1.0, atol=1e-5), "softmax rows != 1"

    # ragged-HW masking path: 15*15 = 225 -> one full tile + one masked tile
    x_odd = jax.random.normal(keys[10], (B, Cin, 15, 15), jnp.float32)
    a_pal2 = jax.block_until_ready(attention2d_pallas(x_odd, w1, b1, w2, b2, hw_tile=128))
    a_ref2 = attention2d_ref(x_odd, w1, b1, w2, b2)
    assert jnp.allclose(a_pal2, a_ref2, atol=1e-5, rtol=1e-5), "masked attention mismatch"

    # --- full BasicBlock forward (conv shortcut branch) -----------------------
    out = jax.block_until_ready(basic_block_forward(x, params, stride=stride,
                                                    use_pallas=True))
    ref = jax.block_until_ready(basic_block_forward(x, params, stride=stride,
                                                    use_pallas=False))
    assert out.shape == (B, Cout, H // stride, W // stride)
    assert jnp.allclose(out, ref, atol=1e-4, rtol=1e-4), "BasicBlock mismatch vs reference"
    assert bool(jnp.all(out >= 0.0)), "final ReLU violated"

    # --- identity-shortcut block (stride=1, Cin==Cout) -----------------------
    k2s = jax.random.split(keys[11], 6)
    x2 = jax.random.normal(k2s[0], (B, Cout, 8, 8), jnp.float32)
    params2 = {
        "dyn1_attn": make_attn_params(k2s[1], Cout, K),
        "dyn1_w": jax.random.normal(k2s[2], (K, Cout, Cout, 3, 3), jnp.float32)
                  / (Cout * 9) ** 0.5,
        "bn1": make_bn_params(k2s[3], Cout),
        "dyn2_attn": make_attn_params(k2s[4], Cout, K),
        "dyn2_w": jax.random.normal(k2s[5], (K, Cout, Cout, 3, 3), jnp.float32)
                  / (Cout * 9) ** 0.5,
        "bn2": make_bn_params(k2s[3], Cout),
    }
    out2 = jax.block_until_ready(basic_block_forward(x2, params2, stride=1,
                                                     use_pallas=True))
    ref2 = jax.block_until_ready(basic_block_forward(x2, params2, stride=1,
                                                     use_pallas=False))
    assert out2.shape == (B, Cout, 8, 8)
    assert jnp.allclose(out2, ref2, atol=1e-4, rtol=1e-4), "identity-shortcut block mismatch"

    print("KERNEL_OK")
</pallas_src>

<mosaic_0001>
module attributes {stable_mosaic.version = 11 : i64} {
  func.func @_attention2d_kernel(%arg0: i32, %arg1: i32, %arg2: memref<1x4x128xf32, #tpu.memory_space<vmem>>, %arg3: memref<4x4xf32, #tpu.memory_space<vmem>>, %arg4: memref<1x4xf32, #tpu.memory_space<vmem>>, %arg5: memref<4x4xf32, #tpu.memory_space<vmem>>, %arg6: memref<1x4xf32, #tpu.memory_space<vmem>>, %arg7: memref<1x1x4xf32, #tpu.memory_space<vmem>>, %arg8: memref<1x4xf32, #tpu.memory_space<vmem>>) attributes {dimension_semantics = [#tpu.dimension_semantics<parallel>, #tpu.dimension_semantics<arbitrary>], iteration_bounds = array<i64: 2, 2>, scalar_prefetch = 0 : i64, scratch_operands = 1 : i64, tpu.core_type = #tpu.core_type<tc>, window_params = [{transform_indices = @transform_0, window_bounds = array<i64: 1, 4, 128>}, {pipeline_mode = #tpu.pipeline_mode<synchronous>, transform_indices = @transform_1, window_bounds = array<i64: 4, 4>}, {pipeline_mode = #tpu.pipeline_mode<synchronous>, transform_indices = @transform_2, window_bounds = array<i64: 1, 4>}, {pipeline_mode = #tpu.pipeline_mode<synchronous>, transform_indices = @transform_3, window_bounds = array<i64: 4, 4>}, {pipeline_mode = #tpu.pipeline_mode<synchronous>, transform_indices = @transform_4, window_bounds = array<i64: 1, 4>}, {transform_indices = @transform_5, window_bounds = array<i64: 1, 1, 4>}]} {
    %c0_i32 = arith.constant 0 : i32
    %0 = arith.cmpi eq, %arg1, %c0_i32 : i32
    %1 = arith.extui %0 : i1 to i32
    %c0_i32_0 = arith.constant 0 : i32
    %2 = arith.cmpi ne, %1, %c0_i32_0 : i32
    scf.if %2 {
      %cst_8 = arith.constant 0.000000e+00 : f32
      %11 = vector.broadcast %cst_8 : f32 to vector<1x4xf32>
      %c0_9 = arith.constant 0 : index
      %c0_10 = arith.constant 0 : index
      %12 = vector.load %arg8[%c0_9, %c0_10] : memref<1x4xf32, #tpu.memory_space<vmem>>, vector<1x4xf32>
      tpu.vector_store %arg8[%c0_9, %c0_10], %11 {strides = array<i32>} : memref<1x4xf32, #tpu.memory_space<vmem>>, vector<1x4xf32>,
    } else {
    }
    %c0 = arith.constant 0 : index
    %c0_1 = arith.constant 0 : index
    %c0_2 = arith.constant 0 : index
    %3 = vector.load %arg2[%c0, %c0_1, %c0_2] : memref<1x4x128xf32, #tpu.memory_space<vmem>>, vector<1x4x128xf32>
    %c0_3 = arith.constant 0 : index
    %c0_4 = arith.constant 0 : index
    %4 = vector.load %arg8[%c0_3, %c0_4] : memref<1x4xf32, #tpu.memory_space<vmem>>, vector<1x4xf32>
    %cst = arith.constant dense<0.000000e+00> : vector<1x4xf32>
    %5 = vector.multi_reduction <add>, %3, %cst [2] : vector<1x4x128xf32> to vector<1x4xf32>
    %6 = arith.addf %4, %5 : vector<1x4xf32>
    %c0_5 = arith.constant 0 : index
    %c0_6 = arith.constant 0 : index
    %7 = vector.load %arg8[%c0_5, %c0_6] : memref<1x4xf32, #tpu.memory_space<vmem>>, vector<1x4xf32>
    tpu.vector_store %arg8[%c0_5, %c0_6], %6 {strides = array<i32>} : memref<1x4xf32, #tpu.memory_space<vmem>>, vector<1x4xf32>,
    %c1_i32 = arith.constant 1 : i32
    %8 = arith.cmpi eq, %arg1, %c1_i32 : i32
    %9 = arith.extui %8 : i1 to i32
    %c0_i32_7 = arith.constant 0 : i32
    %10 = arith.cmpi ne, %9, %c0_i32_7 : i32
    scf.if %10 {
      %c0_8 = arith.constant 0 : index
      %c0_9 = arith.constant 0 : index
      %11 = vector.load %arg8[%c0_8, %c0_9] : memref<1x4xf32, #tpu.memory_space<vmem>>, vector<1x4xf32>
      %c0_10 = arith.constant 0 : index
      %c0_11 = arith.constant 0 : index
      %12 = vector.load %arg3[%c0_10, %c0_11] : memref<4x4xf32, #tpu.memory_space<vmem>>, vector<4x4xf32>
      %cst_12 = arith.constant dense<0.000000e+00> : vector<1x4xf32>
      %13 = tpu.matmul %11, %12, %cst_12 {dimension_numbers = #tpu.dot_dimension_numbers<[1], [0], [0], [1], [0, 0, 1, 1], [], []>} : vector<1x4xf32>, vector<4x4xf32>, vector<1x4xf32> -> vector<1x4xf32>
      %c0_13 = arith.constant 0 : index
      %c0_14 = arith.constant 0 : index
      %14 = vector.load %arg4[%c0_13, %c0_14] : memref<1x4xf32, #tpu.memory_space<vmem>>, vector<1x4xf32>
      %15 = arith.addf %13, %14 : vector<1x4xf32>
      %cst_15 = arith.constant 0.000000e+00 : f32
      %16 = vector.broadcast %cst_15 : f32 to vector<1x4xf32>
      %17 = arith.maximumf %15, %16 : vector<1x4xf32>
      %c0_16 = arith.constant 0 : index
      %c0_17 = arith.constant 0 : index
      %18 = vector.load %arg5[%c0_16, %c0_17] : memref<4x4xf32, #tpu.memory_space<vmem>>, vector<4x4xf32>
      %cst_18 = arith.constant dense<0.000000e+00> : vector<1x4xf32>
      %19 = tpu.matmul %17, %18, %cst_18 {dimension_numbers = #tpu.dot_dimension_numbers<[1], [0], [0], [1], [0, 0, 1, 1], [], []>} : vector<1x4xf32>, vector<4x4xf32>, vector<1x4xf32> -> vector<1x4xf32>
      %c0_19 = arith.constant 0 : index
      %c0_20 = arith.constant 0 : index
      %20 = vector.load %arg6[%c0_19, %c0_20] : memref<1x4xf32, #tpu.memory_space<vmem>>, vector<1x4xf32>
      %21 = arith.addf %19, %20 : vector<1x4xf32>
      %cst_21 = arith.constant dense<0xFF800000> : vector<1xf32>
      %22 = vector.multi_reduction <maximumf>, %21, %cst_21 [1] : vector<1x4xf32> to vector<1xf32>
      %23 = vector.shape_cast %22 : vector<1xf32> to vector<1x1xf32>
      %24 = vector.broadcast %23 : vector<1x1xf32> to vector<1x4xf32>
      %25 = arith.subf %21, %24 : vector<1x4xf32>
      %26 = math.exp %25 : vector<1x4xf32>
      %cst_22 = arith.constant dense<0.000000e+00> : vector<1xf32>
      %27 = vector.multi_reduction <add>, %26, %cst_22 [1] : vector<1x4xf32> to vector<1xf32>
      %28 = vector.shape_cast %27 : vector<1xf32> to vector<1x1xf32>
      %29 = vector.broadcast %28 : vector<1x1xf32> to vector<1x4xf32>
      %30 = arith.divf %26, %29 : vector<1x4xf32>
      %31 = vector.shape_cast %30 : vector<1x4xf32> to vector<1x1x4xf32>
      %c0_23 = arith.constant 0 : index
      %c0_24 = arith.constant 0 : index
      %c0_25 = arith.constant 0 : index
      %32 = vector.load %arg7[%c0_23, %c0_24, %c0_25] : memref<1x1x4xf32, #tpu.memory_space<vmem>>, vector<1x1x4xf32>
      tpu.vector_store %arg7[%c0_23, %c0_24, %c0_25], %31 {strides = array<i32>} : memref<1x1x4xf32, #tpu.memory_space<vmem>>, vector<1x1x4xf32>,
    } else {
    }
    return
  }
  func.func @transform_0(%arg0: i32, %arg1: i32) -> (i32, i32, i32) {
    %c0_i32 = arith.constant 0 : i32
    %c0_i32_0 = arith.constant 0 : i32
    return %arg0, %c0_i32, %arg1 : i32, i32, i32
  }
  func.func @transform_1(%arg0: i32, %arg1: i32) -> (i32, i32) {
    %c0_i32 = arith.constant 0 : i32
    %c0_i32_0 = arith.constant 0 : i32
    %c0_i32_1 = arith.constant 0 : i32
    return %c0_i32, %c0_i32_0 : i32, i32
  }
  func.func @transform_2(%arg0: i32, %arg1: i32) -> (i32, i32) {
    %c0_i32 = arith.constant 0 : i32
    %c0_i32_0 = arith.constant 0 : i32
    %c0_i32_1 = arith.constant 0 : i32
    return %c0_i32, %c0_i32_0 : i32, i32
  }
  func.func @transform_3(%arg0: i32, %arg1: i32) -> (i32, i32) {
    %c0_i32 = arith.constant 0 : i32
    %c0_i32_0 = arith.constant 0 : i32
    %c0_i32_1 = arith.constant 0 : i32
    return %c0_i32, %c0_i32_0 : i32, i32
  }
  func.func @transform_4(%arg0: i32, %arg1: i32) -> (i32, i32) {
    %c0_i32 = arith.constant 0 : i32
    %c0_i32_0 = arith.constant 0 : i32
    %c0_i32_1 = arith.constant 0 : i32
    return %c0_i32, %c0_i32_0 : i32, i32
  }
  func.func @transform_5(%arg0: i32, %arg1: i32) -> (i32, i32, i32) {
    %c0_i32 = arith.constant 0 : i32
    %c0_i32_0 = arith.constant 0 : i32
    %c0_i32_1 = arith.constant 0 : i32
    return %arg0, %c0_i32, %c0_i32_0 : i32, i32, i32
  }
}

</mosaic_0001>

<llo_original>
// kernel: tpu_custom_call.1
$region0: #{tpu_custom_call.1}
  #allocation0 [shape = 'u32[]', space=smem, size = 0x4, offset = 0x4, fixed_abs, tag = 'smem constant byte address 0x4 - core index']
  #allocation1 [shape = 'u32[144,128]{1,0:T(1,128)}', space=vmem, size = 0x12000, scoped, tag = 'internal scratch']
  #allocation2 [shape = 'f32[1,4]{1,0:T(1,128)}', space=vmem, size = 0x200, scoped, tag = 'scratch operand']
  %s0 = inlined_call_operand.hbm [shape: f32[2,4,256], index: 0, kind: input, shape index: {}]
  %s1 = inlined_call_operand.hbm [shape: f32[4,4], index: 1, kind: input, shape index: {}]
  %s2 = inlined_call_operand.vmem [shape: f32[1,4], index: 2, kind: input, shape index: {}]
  %s3 = inlined_call_operand.vmem [shape: f32[4,4], index: 3, kind: input, shape index: {}]
  %s4 = inlined_call_operand.vmem [shape: f32[1,4], index: 4, kind: input, shape index: {}]
  %s5 = inlined_call_operand.hbm [shape: f32[2,1,4], index: 5, kind: output, shape index: {}]
  %s6 = sld [smem:[#allocation0]]
  $region69: #{tpu_custom_call.1} parent=0
    _
  %s8 = ssub.s32 1, %s6
  %s9 = scalar_select 0, %s8, %s6
  $region1: #{tpu_custom_call.1} parent=0
    #allocation3 [shape = 'u8[4096]{0}', space=vmem, size = 0x1000, scoped, tag = 'input window, operand 0']
    #allocation4 [shape = 's32[2]{0}', space=sflag, size = 0x8, scoped, tag = 'scoped memory for tpu_custom_call.1']
    #allocation5 [shape = 's32[2]{0}', space=sflag, size = 0x8, scoped, tag = 'scoped memory for tpu_custom_call.1']
    #allocation6 [shape = 'u8[2048]{0}', space=vmem, size = 0x800, scoped, tag = 'input window, operand 1, single buffered']
    #allocation7 [shape = 's32[1]{0}', space=sflag, size = 0x4, scoped, tag = 'scoped memory for tpu_custom_call.1']
    #allocation8 [shape = 'u8[1024]{0}', space=vmem, size = 0x400, scoped, tag = 'output window, operand 0']
    %10 = vsyncpa [#allocation4], 0
    %s11 = scalar_lea.sflag [#allocation4], 1
    %12 = vsyncpa %s11, 0
    %13 = vsyncpa [#allocation7], 0
    %14 = vsyncpa [#allocation5], 0
    %s15 = scalar_lea.sflag [#allocation5], 1
    %16 = vsyncpa %s15, 0
    loop: start=0, step=1, limit=6
    $region2: #{tpu_custom_call.1} parent=1 // loop_pre_header
      _
    $region3: #{tpu_custom_call.1} parent=1 // loop_header
      %s18 = sphi 0, %s22
      %p19 = scmp.ge.s32.totalorder %s18, 6
      %s25 = sphi 0, %s37
      %s26 = sphi 0, %s33
      %s27 = sphi 0, %s25
      %s28 = sphi 0, %s26
      %s29 = sphi 0, %s27
      %s30 = sphi 0, %s28
      %s42 = sphi 0, %s44
      %s45 = sphi 0, %s42
      %s46 = sphi 0, %s45
      %s62 = sphi 0, %s46
      %s66 = sphi 0, %s66
      %s68 = sphi 0, %s66
      %s69 = sphi 0, %s68
      %s83 = sphi 0, %s69
      %s87 = sphi 0, %s87
      %s89 = sphi 0, %s87
      %s90 = sphi 0, %s89
      %s104 = sphi 0, %s90
      %s108 = sphi 0, %s108
      %s110 = sphi 0, %s108
      %s111 = sphi 0, %s110
      %s125 = sphi 0, %s111
      %s129 = sphi 0, %s129
      %s131 = sphi 0, %s129
      %s132 = sphi 0, %s131
      %s146 = sphi 0, %s132
      %s152 = sphi 0, %s154
      %s155 = sphi 0, %s152
      %s156 = sphi 0, %s155
      %s172 = sphi 0, %s156
    $region4: #{tpu_custom_call.1} parent=1 // loop_header_branch
      %21 = sbr.rel (%p19) target = $region8
    $region5: #{tpu_custom_call.1} parent=1 // loop_body
      %s23 = ssub.s32 %s18, 1
      %s24 = ssub.s32 %s18, 2
      %s31 = sadd.s32 1, %s26
      %p32 = scmp.ge.s32.totalorder %s31, 2
      %s33 = scalar_select %p32, 0, %s31
      %s34 = sadd.s32 1, %s25
      %s35 = scalar_select %p32, %s34, %s25
      %p36 = scmp.ge.s32.totalorder %s35, 2
      %s37 = scalar_select %p36, 0, %s35
      %s38 = ssub.s32 %s25, %s37
      %s39 = ssub.s32 %s26, %s33
      %s40 = sor.u32 %s38, %s39
      %p41 = scmp.eq.s32.totalorder %s40, 0
      %s43 = sadd.s32 %s42, 1
      %s44 = scalar_select %p41, %s42, %s43
      %p47 = pneg %p41
      %p48 = scmp.eq.s32.totalorder %s18, 3
      %p49 = por %p47, %p48
      %p50 = scmp.ne.s32.totalorder %s42, %s45
      %p51 = scmp.eq.s32.totalorder %s18, 0
      %p52 = por %p50, %p51
      %p53 = scmp.ne.s32.totalorder %s42, %s45
      %p54 = scmp.eq.s32.totalorder %s23, 3
      %p55 = por %p53, %p54
      %p56 = scmp.ne.s32.totalorder %s45, %s46
      %p57 = scmp.eq.s32.totalorder %s23, 0
      %p58 = por %p56, %p57
      %p59 = scmp.ne.s32.totalorder %s45, %s46
      %p60 = scmp.eq.s32.totalorder %s24, 3
      %p61 = por %p59, %p60
      %p63 = scmp.ne.s32.totalorder %s46, %s62
      %p64 = scmp.eq.s32.totalorder %s24, 0
      %p65 = por %p63, %p64
      %s67 = sadd.s32 %s66, 1
      %p70 = scmp.eq.s32.totalorder %s18, 3
      %p71 = scmp.ne.s32.totalorder %s66, %s68
      %p72 = scmp.eq.s32.totalorder %s18, 0
      %p73 = por %p71, %p72
      %p74 = scmp.ne.s32.totalorder %s66, %s68
      %p75 = scmp.eq.s32.totalorder %s23, 3
      %p76 = por %p74, %p75
      %p77 = scmp.ne.s32.totalorder %s68, %s69
      %p78 = scmp.eq.s32.totalorder %s23, 0
      %p79 = por %p77, %p78
      %p80 = scmp.ne.s32.totalorder %s68, %s69
      %p81 = scmp.eq.s32.totalorder %s24, 3
      %p82 = por %p80, %p81
      %p84 = scmp.ne.s32.totalorder %s69, %s83
      %p85 = scmp.eq.s32.totalorder %s24, 0
      %p86 = por %p84, %p85
      %s88 = sadd.s32 %s87, 1
      %p91 = scmp.eq.s32.totalorder %s18, 3
      %p92 = scmp.ne.s32.totalorder %s87, %s89
      %p93 = scmp.eq.s32.totalorder %s18, 0
      %p94 = por %p92, %p93
      %p95 = scmp.ne.s32.totalorder %s87, %s89
      %p96 = scmp.eq.s32.totalorder %s23, 3
      %p97 = por %p95, %p96
      %p98 = scmp.ne.s32.totalorder %s89, %s90
      %p99 = scmp.eq.s32.totalorder %s23, 0
      %p100 = por %p98, %p99
      %p101 = scmp.ne.s32.totalorder %s89, %s90
      %p102 = scmp.eq.s32.totalorder %s24, 3
      %p103 = por %p101, %p102
      %p105 = scmp.ne.s32.totalorder %s90, %s104
      %p106 = scmp.eq.s32.totalorder %s24, 0
      %p107 = por %p105, %p106
      %s109 = sadd.s32 %s108, 1
      %p112 = scmp.eq.s32.totalorder %s18, 3
      %p113 = scmp.ne.s32.totalorder %s108, %s110
      %p114 = scmp.eq.s32.totalorder %s18, 0
      %p115 = por %p113, %p114
      %p116 = scmp.ne.s32.totalorder %s108, %s110
      %p117 = scmp.eq.s32.totalorder %s23, 3
      %p118 = por %p116, %p117
      %p119 = scmp.ne.s32.totalorder %s110, %s111
      %p120 = scmp.eq.s32.totalorder %s23, 0
      %p121 = por %p119, %p120
      %p122 = scmp.ne.s32.totalorder %s110, %s111
      %p123 = scmp.eq.s32.totalorder %s24, 3
      %p124 = por %p122, %p123
      %p126 = scmp.ne.s32.totalorder %s111, %s125
      %p127 = scmp.eq.s32.totalorder %s24, 0
      %p128 = por %p126, %p127
      %s130 = sadd.s32 %s129, 1
      %p133 = scmp.eq.s32.totalorder %s18, 3
      %p134 = scmp.ne.s32.totalorder %s129, %s131
      %p135 = scmp.eq.s32.totalorder %s18, 0
      %p136 = por %p134, %p135
      %p137 = scmp.ne.s32.totalorder %s129, %s131
      %p138 = scmp.eq.s32.totalorder %s23, 3
      %p139 = por %p137, %p138
      %p140 = scmp.ne.s32.totalorder %s131, %s132
      %p141 = scmp.eq.s32.totalorder %s23, 0
      %p142 = por %p140, %p141
      %p143 = scmp.ne.s32.totalorder %s131, %s132
      %p144 = scmp.eq.s32.totalorder %s24, 3
      %p145 = por %p143, %p144
      %p147 = scmp.ne.s32.totalorder %s132, %s146
      %p148 = scmp.eq.s32.totalorder %s24, 0
      %p149 = por %p147, %p148
      %s150 = ssub.s32 %s25, %s37
      %p151 = scmp.eq.s32.totalorder %s150, 0
      %s153 = sadd.s32 %s152, 1
      %s154 = scalar_select %p151, %s152, %s153
      %p157 = pneg %p151
      %p158 = scmp.eq.s32.totalorder %s18, 3
      %p159 = por %p157, %p158
      %p160 = scmp.ne.s32.totalorder %s152, %s155
      %p161 = scmp.eq.s32.totalorder %s18, 0
      %p162 = por %p160, %p161
      %p163 = scmp.ne.s32.totalorder %s152, %s155
      %p164 = scmp.eq.s32.totalorder %s23, 3
      %p165 = por %p163, %p164
      %p166 = scmp.ne.s32.totalorder %s155, %s156
      %p167 = scmp.eq.s32.totalorder %s23, 0
      %p168 = por %p166, %p167
      %p169 = scmp.ne.s32.totalorder %s155, %s156
      %p170 = scmp.eq.s32.totalorder %s24, 3
      %p171 = por %p169, %p170
      %p173 = scmp.ne.s32.totalorder %s156, %s172
      %p174 = scmp.eq.s32.totalorder %s24, 0
      %p175 = por %p173, %p174
      %p176 = scmp.le.s32.totalorder 1, %s18
      %p177 = scmp.lt.s32.totalorder %s18, 5
      %p178 = pnand %p176, %p177
      %p179 = pneg %p178
      // Predicated region
      $region9: #{tpu_custom_call.1} parent=5 // pred_check
        _
      $region10: #{tpu_custom_call.1} parent=5 // pred_check_branch
        %181 = sbr.rel (%p178) target = $region12
      $region11: #{tpu_custom_call.1} parent=5 // pred_region
        %s182 = ssub.s32 %s18, 1
        // Predicated region
        $region13: #{tpu_custom_call.1} parent=11 // pred_check
          %p183 = pneg %p79
        $region14: #{tpu_custom_call.1} parent=11 // pred_check_branch
          %185 = sbr.rel (%p183) target = $region16
        $region15: #{tpu_custom_call.1} parent=11 // pred_region
          %s187 = ssub.s32 64, 64
          %188 = vsyncadd [#allocation7], %s187
          %s190 = sshll.u32 [#allocation6], 4
          %s191 = int_to_ptr.vmem [resolvable:$true] %s190
          %193 = dma.hbm_to_vmem [thread:$0]  %s1, 64, %s191, [#allocation7]
        $region16: #{tpu_custom_call.1} parent=11 // pred_fallthru
          _
        // Predicated region
        $region17: #{tpu_custom_call.1} parent=11 // pred_check
          %p194 = pneg %p100
        $region18: #{tpu_custom_call.1} parent=11 // pred_check_branch
          %196 = sbr.rel (%p194) target = $region20
        $region19: #{tpu_custom_call.1} parent=11 // pred_region
          _
        $region20: #{tpu_custom_call.1} parent=11 // pred_fallthru
          _
        // Predicated region
        $region21: #{tpu_custom_call.1} parent=11 // pred_check
          %p197 = pneg %p121
        $region22: #{tpu_custom_call.1} parent=11 // pred_check_branch
          %199 = sbr.rel (%p197) target = $region24
        $region23: #{tpu_custom_call.1} parent=11 // pred_region
          _
        $region24: #{tpu_custom_call.1} parent=11 // pred_fallthru
          _
        // Predicated region
        $region25: #{tpu_custom_call.1} parent=11 // pred_check
          %p200 = pneg %p142
        $region26: #{tpu_custom_call.1} parent=11 // pred_check_branch
          %202 = sbr.rel (%p200) target = $region28
        $region27: #{tpu_custom_call.1} parent=11 // pred_region
          _
        $region28: #{tpu_custom_call.1} parent=11 // pred_fallthru
          _
      $region12: #{tpu_custom_call.1} parent=5 // pred_fallthru
        _
      %p203 = scmp.lt.s32.totalorder %s18, 4
      // Predicated region
      $region29: #{tpu_custom_call.1} parent=5 // pred_check
        %p204 = pneg %p203
      $region30: #{tpu_custom_call.1} parent=5 // pred_check_branch
        %206 = sbr.rel (%p204) target = $region32
      $region31: #{tpu_custom_call.1} parent=5 // pred_region
        // Predicated region
        $region33: #{tpu_custom_call.1} parent=31 // pred_check
          %p207 = pneg %p52
        $region34: #{tpu_custom_call.1} parent=31 // pred_check_branch
          %209 = sbr.rel (%p207) target = $region36
        $region35: #{tpu_custom_call.1} parent=31 // pred_region
          %s210 = sand.u32 %s42, 1
          %s211 = scalar_lea.sflag [#allocation4], %s210
          %s212 = sand.u32 %s42, 1
          %s213 = smul.addr %s212, 4
          %s214 = scalar_lea.vmem [#allocation3], %s213
          %s216 = ssub.s32 64, 64
          %217 = vsyncadd %s211, %s216
          %s218 = smul.addr %s25, 2
          %s219 = sadd.s32 %s26, %s218
          %s220 = smul.addr %s219, 64
          %s221 = scalar_lea.hbm %s0, %s220
          %s223 = sshll.u32 %s214, 4
          %s224 = int_to_ptr.vmem [resolvable:$true] %s223
          %226 = dma.hbm_to_vmem [thread:$0]  %s221, 64, %s224, %s211
        $region36: #{tpu_custom_call.1} parent=31 // pred_fallthru
          _
      $region32: #{tpu_custom_call.1} parent=5 // pred_fallthru
        _
      %p227 = scmp.le.s32.totalorder 1, %s18
      %p228 = scmp.lt.s32.totalorder %s18, 5
      %p229 = pnand %p227, %p228
      %p230 = pneg %p229
      // Predicated region
      $region37: #{tpu_custom_call.1} parent=5 // pred_check
        _
      $region38: #{tpu_custom_call.1} parent=5 // pred_check_branch
        %232 = sbr.rel (%p229) target = $region40
      $region39: #{tpu_custom_call.1} parent=5 // pred_region
        %s233 = ssub.s32 %s18, 1
        %s234 = sand.u32 %s45, 1
        %s235 = scalar_lea.sflag [#allocation4], %s234
        %s236 = sand.u32 %s45, 1
        %s237 = smul.addr %s236, 4
        %s238 = scalar_lea.vmem [#allocation3], %s237
        // Predicated region
        $region41: #{tpu_custom_call.1} parent=39 // pred_check
          %p239 = pneg %p58
        $region42: #{tpu_custom_call.1} parent=39 // pred_check_branch
          %241 = sbr.rel (%p239) target = $region44
        $region43: #{tpu_custom_call.1} parent=39 // pred_region
          %242 = dma.done %s235, 64
        $region44: #{tpu_custom_call.1} parent=39 // pred_fallthru
          _
        // Predicated region
        $region45: #{tpu_custom_call.1} parent=39 // pred_check
          %p243 = pneg %p79
        $region46: #{tpu_custom_call.1} parent=39 // pred_check_branch
          %245 = sbr.rel (%p243) target = $region48
        $region47: #{tpu_custom_call.1} parent=39 // pred_region
          %246 = dma.done [#allocation7], 64
        $region48: #{tpu_custom_call.1} parent=39 // pred_fallthru
          _
        %s247 = sand.u32 %s45, 1
        %s248 = scalar_lea.sflag [#allocation4], %s247
        %s249 = sand.u32 %s45, 1
        %s250 = smul.addr %s249, 4
        %s251 = scalar_lea.vmem [#allocation3], %s250
        %p252 = pneg %p58
        %p253 = pneg %p55
        %p254 = pneg %p79
        %p255 = pneg %p76
        %p256 = pneg %p100
        %p257 = pneg %p97
        %p258 = pneg %p121
        %p259 = pneg %p118
        %p260 = pneg %p142
        %p261 = pneg %p139
        %p262 = pneg %p168
        %p263 = pneg %p165
        %s264 = sand.u32 %s155, 1
        %s265 = scalar_lea.sflag [#allocation5], %s264
        %s266 = sand.u32 %s155, 1
        %s267 = scalar_lea.vmem [#allocation8], %s266
        %p268 = scmp.eq.s32.totalorder %s28, 0
        // Predicated region
        $region49: #{tpu_custom_call.1} parent=39 // pred_check
          %p269 = pneg %p268
        $region50: #{tpu_custom_call.1} parent=39 // pred_check_branch
          %271 = sbr.rel (%p269) target = $region52
        $region51: #{tpu_custom_call.1} parent=39 // pred_region
          %vm272 = vcmask 24576
          %273 = vst.msk [vmem:[#allocation2] sm:$0x1] %vm272, 0.0
        $region52: #{tpu_custom_call.1} parent=39 // pred_fallthru
          _
        %v274 = vld [vmem:[%s238] sm:$0xf]
        %v275 = vld [vmem:[#allocation2] sm:$0x1]
        %vm276 = vcmask 1043456
        %v277 = vsel %vm276, %v274, 0.0
        %278 = vadd.xlane.f32.xlu0 %v277
        %v279 = vpop.xlane.xlu0 %278
        %v281 = vlaneseq
        %v282 = vshrl.u32 %v281, 7
        %v283 = vsub.s32 0, %v282
        %v284 = vrot.slane %v279, %v283
        %v285 = vlaneseq
        %v286 = vshrl.u32 %v285, 7
        %v287 = vsub.s32 1, %v286
        %v288 = vrot.slane %v279, %v287
        %v289 = vlaneseq
        %v290 = vshrl.u32 %v289, 7
        %v291 = vsub.s32 2, %v290
        %v292 = vrot.slane %v279, %v291
        %v293 = vlaneseq
        %v294 = vshrl.u32 %v293, 7
        %v295 = vsub.s32 3, %v294
        %v296 = vrot.slane %v279, %v295
        %v297 = vcombine.low %v284, %v288
        %v298 = vcombine.low %v292, %v296
        %v300 = vunpack.c.l.s4 1966171168
        %v301 = vunpack.c.0.s8 %v300
        %v302 = vlaneseq
        %v303 = vshrl.u32 %v302, 7
        %v304 = vsub.s32 %v301, %v303
        %v305 = vrot.slane %v297, %v304
        %v307 = vunpack.c.l.s4 1966171168
        %v308 = vunpack.c.0.s8 %v307
        %v309 = vlaneseq
        %v310 = vshrl.u32 %v309, 7
        %v311 = vsub.s32 %v308, %v310
        %v312 = vrot.slane %v298, %v311
        %v313 = vcombine.low %v305, %v312
        %v315 = vunpack.c.l.s4 1966171168
        %v316 = vunpack.c.0.s8 %v315
        %v317 = vlaneseq
        %v318 = vshrl.u32 %v317, 7
        %v319 = vsub.s32 %v316, %v318
        %v320 = vrot.slane %v313, %v319
        %321 = vset.pattern.permute.xlu0 0
        %322 = vperm.xlu0 %321, %v320
        %v323 = vpop.permute.xlu0 %322
        %v324 = vlaneseq
        %v325 = vand.u32 %v324, 127
        %v326 = vlaneseq
        %v327 = vshrl.u32 %v326, 7
        %v328 = vsub.s32 %v325, %v327
        %v329 = vrot.slane %v323, %v328
        %v331 = vunpack.c.l.s4 1966171168
        %v332 = vunpack.c.0.s8 %v331
        %v333 = vlaneseq
        %v334 = vshrl.u32 %v333, 7
        %v335 = vsub.s32 %v332, %v334
        %v336 = vrot.slane %v329, %v335
        %v338 = vunpack.c.l.s4 1966171168
        %v339 = vunpack.c.0.s8 %v338
        %v340 = vlaneseq
        %v341 = vshrl.u32 %v340, 7
        %v342 = vsub.s32 %v339, %v341
        %v343 = vrot.slane %v336, %v342
        %v345 = vadd.f32 %v275, %v343
        %vm346 = vcmask 24576
        %347 = vst.msk [vmem:[#allocation2] sm:$0x1] %vm346, %v345
        %p348 = scmp.eq.s32.totalorder %s28, 1
        // Predicated region
        $region53: #{tpu_custom_call.1} parent=39 // pred_check
          %p349 = pneg %p348
        $region54: #{tpu_custom_call.1} parent=39 // pred_check_branch
          %351 = sbr.rel (%p349) target = $region56
        $region55: #{tpu_custom_call.1} parent=39 // pred_region
          %v352 = vld [vmem:[#allocation2] sm:$0x1]
          %v353 = vld [vmem:[#allocation6] sm:$0xf]
          %v354 = vld [vmem:[%s2] sm:$0x1]
          %vm355 = vcmask 31744
          %v357 = vsel %vm355, %v352, 0
          %v360 = vsel %vm276, %v353, 0
          %362 = vmatprep.subr.mxu0 0.0
          %363 = vmatpush1.msra.mxu0 0.0
          %364 = vmatprep.subr.mxu0 0.0
          %365 = vmatpush1.msra.mxu0 0.0
          %366 = vmatprep.subr.mxu0 0.0
          %367 = vmatpush1.msra.mxu0 0.0
          %368 = vmatprep.subr.mxu0 0.0
          %369 = vmatpush1.msra.mxu0 0.0
          %370 = vmatprep.subr.mxu0 0.0
          %371 = vmatpush1.msra.mxu0 0.0
          %372 = vmatprep.subr.mxu0 0.0
          %373 = vmatpush1.msra.mxu0 0.0
          %374 = vmatprep.subr.mxu0 0.0
          %375 = vmatpush1.msra.mxu0 0.0
          %376 = vmatprep.subr.mxu0 0.0
          %377 = vmatpush1.msra.mxu0 0.0
          %378 = vmatprep.subr.mxu0 0.0
          %379 = vmatpush1.msra.mxu0 0.0
          %380 = vmatprep.subr.mxu0 0.0
          %381 = vmatpush1.msra.mxu0 0.0
          %382 = vmatprep.subr.mxu0 0.0
          %383 = vmatpush1.msra.mxu0 0.0
          %384 = vmatprep.subr.mxu0 0.0
          %385 = vmatpush1.msra.mxu0 0.0
          %386 = vmatprep.subr.mxu0 0.0
          %387 = vmatpush1.msra.mxu0 0.0
          %388 = vmatprep.subr.mxu0 0.0
          %389 = vmatpush1.msra.mxu0 0.0
          %390 = vmatprep.subr.mxu0 0.0
          %391 = vmatpush1.msra.mxu0 0.0
          %392 = vmatprep.subr.mxu0 0.0
          %393 = vmatpush1.msra.mxu0 %v360
          %394 = vmatprep.subr.mxu0 0.0
          %395 = vmatpush2.msra.mxu0 0.0
          %396 = vmatprep.subr.mxu0 0.0
          %397 = vmatpush2.msra.mxu0 0.0
          %398 = vmatprep.subr.mxu0 0.0
          %399 = vmatpush2.msra.mxu0 0.0
          %400 = vmatprep.subr.mxu0 0.0
          %401 = vmatpush2.msra.mxu0 0.0
          %402 = vmatprep.subr.mxu0 0.0
          %403 = vmatpush2.msra.mxu0 0.0
          %404 = vmatprep.subr.mxu0 0.0
          %405 = vmatpush2.msra.mxu0 0.0
          %406 = vmatprep.subr.mxu0 0.0
          %407 = vmatpush2.msra.mxu0 0.0
          %408 = vmatprep.subr.mxu0 0.0
          %409 = vmatpush2.msra.mxu0 0.0
          %410 = vmatprep.subr.mxu0 0.0
          %411 = vmatpush2.msra.mxu0 0.0
          %412 = vmatprep.subr.mxu0 0.0
          %413 = vmatpush2.msra.mxu0 0.0
          %414 = vmatprep.subr.mxu0 0.0
          %415 = vmatpush2.msra.mxu0 0.0
          %416 = vmatprep.subr.mxu0 0.0
          %417 = vmatpush2.msra.mxu0 0.0
          %418 = vmatprep.subr.mxu0 0.0
          %419 = vmatpush2.msra.mxu0 0.0
          %420 = vmatprep.subr.mxu0 0.0
          %421 = vmatpush2.msra.mxu0 0.0
          %422 = vmatprep.subr.mxu0 0.0
          %423 = vmatpush2.msra.mxu0 0.0
          %424 = vmatprep.subr.mxu0 0.0
          %425 = vmatpush2.msra.mxu0 0.0
          %426 = vmatprep.mubr.f32.mxu0 0.0
          %427 = vmatmul.mubr.f32.gmra.mxu0 %v357
          %v428 = vpop.f32.mrf.mxu0
          %v429 = vadd.f32 %v354, %v428
          %v430 = vpop.f32.mrf.mxu0
          %431 = vdwg.mxu0
          %v432 = vmax.f32 %v429, 0.0
          %v433 = vld [vmem:[%s3] sm:$0xf]
          %v434 = vld [vmem:[%s4] sm:$0x1]
          %v436 = vsel %vm355, %v432, 0
          %v439 = vsel %vm276, %v433, 0
          %441 = vmatprep.subr.mxu0 0.0
          %442 = vmatpush1.msra.mxu0 0.0
          %443 = vmatprep.subr.mxu0 0.0
          %444 = vmatpush1.msra.mxu0 0.0
          %445 = vmatprep.subr.mxu0 0.0
          %446 = vmatpush1.msra.mxu0 0.0
          %447 = vmatprep.subr.mxu0 0.0
          %448 = vmatpush1.msra.mxu0 0.0
          %449 = vmatprep.subr.mxu0 0.0
          %450 = vmatpush1.msra.mxu0 0.0
          %451 = vmatprep.subr.mxu0 0.0
          %452 = vmatpush1.msra.mxu0 0.0
          %453 = vmatprep.subr.mxu0 0.0
          %454 = vmatpush1.msra.mxu0 0.0
          %455 = vmatprep.subr.mxu0 0.0
          %456 = vmatpush1.msra.mxu0 0.0
          %457 = vmatprep.subr.mxu0 0.0
          %458 = vmatpush1.msra.mxu0 0.0
          %459 = vmatprep.subr.mxu0 0.0
          %460 = vmatpush1.msra.mxu0 0.0
          %461 = vmatprep.subr.mxu0 0.0
          %462 = vmatpush1.msra.mxu0 0.0
          %463 = vmatprep.subr.mxu0 0.0
          %464 = vmatpush1.msra.mxu0 0.0
          %465 = vmatprep.subr.mxu0 0.0
          %466 = vmatpush1.msra.mxu0 0.0
          %467 = vmatprep.subr.mxu0 0.0
          %468 = vmatpush1.msra.mxu0 0.0
          %469 = vmatprep.subr.mxu0 0.0
          %470 = vmatpush1.msra.mxu0 0.0
          %471 = vmatprep.subr.mxu0 0.0
          %472 = vmatpush1.msra.mxu0 %v439
          %473 = vmatprep.subr.mxu0 0.0
          %474 = vmatpush2.msra.mxu0 0.0
          %475 = vmatprep.subr.mxu0 0.0
          %476 = vmatpush2.msra.mxu0 0.0
          %477 = vmatprep.subr.mxu0 0.0
          %478 = vmatpush2.msra.mxu0 0.0
          %479 = vmatprep.subr.mxu0 0.0
          %480 = vmatpush2.msra.mxu0 0.0
          %481 = vmatprep.subr.mxu0 0.0
          %482 = vmatpush2.msra.mxu0 0.0
          %483 = vmatprep.subr.mxu0 0.0
          %484 = vmatpush2.msra.mxu0 0.0
          %485 = vmatprep.subr.mxu0 0.0
          %486 = vmatpush2.msra.mxu0 0.0
          %487 = vmatprep.subr.mxu0 0.0
          %488 = vmatpush2.msra.mxu0 0.0
          %489 = vmatprep.subr.mxu0 0.0
          %490 = vmatpush2.msra.mxu0 0.0
          %491 = vmatprep.subr.mxu0 0.0
          %492 = vmatpush2.msra.mxu0 0.0
          %493 = vmatprep.subr.mxu0 0.0
          %494 = vmatpush2.msra.mxu0 0.0
          %495 = vmatprep.subr.mxu0 0.0
          %496 = vmatpush2.msra.mxu0 0.0
          %497 = vmatprep.subr.mxu0 0.0
          %498 = vmatpush2.msra.mxu0 0.0
          %499 = vmatprep.subr.mxu0 0.0
          %500 = vmatpush2.msra.mxu0 0.0
          %501 = vmatprep.subr.mxu0 0.0
          %502 = vmatpush2.msra.mxu0 0.0
          %503 = vmatprep.subr.mxu0 0.0
          %504 = vmatpush2.msra.mxu0 0.0
          %505 = vmatprep.mubr.f32.mxu0 0.0
          %506 = vmatmul.mubr.f32.gmra.mxu0 %v436
          %v507 = vpop.f32.mrf.mxu0
          %v508 = vadd.f32 %v434, %v507
          %v509 = vpop.f32.mrf.mxu0
          %510 = vdwg.mxu0
          %v511 = vsel %vm346, %v508, -inf
          %512 = vmax.xlane.f32.xlu0 %v511
          %v513 = vpop.xlane.xlu0 %512
          %v514 = vsub.f32 %v508, %v513
          %v515 = vmul.f32 %v514, 1.442695
          %v516 = vpow.pop %v515
          %v517 = vsel %vm346, %v516, 0.0
          %518 = vadd.xlane.f32.xlu0 %v517
          %v519 = vpop.xlane.xlu0 %518
          %v520 = vrcp.pop %v519
          %v521 = vmul.f32 %v516, %v520
          %522 = vst.msk [vmem:[%s267] sm:$0x1] %vm346, %v521
        $region56: #{tpu_custom_call.1} parent=39 // pred_fallthru
          _
        %s523 = sand.u32 %s155, 1
        %s524 = scalar_lea.sflag [#allocation5], %s523
        %s525 = sand.u32 %s155, 1
        %s526 = scalar_lea.vmem [#allocation8], %s525
        // Predicated region
        $region57: #{tpu_custom_call.1} parent=39 // pred_check
          %p527 = pneg %p165
        $region58: #{tpu_custom_call.1} parent=39 // pred_check_branch
          %529 = sbr.rel (%p527) target = $region60
        $region59: #{tpu_custom_call.1} parent=39 // pred_region
          %s531 = ssub.s32 16, 16
          %532 = vsyncadd %s524, %s531
          %s533 = smul.addr %s27, 16
          %s534 = scalar_lea.hbm %s5, %s533
          %s536 = sshll.u32 %s526, 4
          %s537 = int_to_ptr.vmem [resolvable:$true] %s536
          %539 = dma.vmem_to_hbm [thread:$0]  %s537, 16, %s534, %s524
        $region60: #{tpu_custom_call.1} parent=39 // pred_fallthru
          _
      $region40: #{tpu_custom_call.1} parent=5 // pred_fallthru
        _
      %p540 = scmp.le.s32.totalorder 2, %s18
      // Predicated region
      $region61: #{tpu_custom_call.1} parent=5 // pred_check
        %p541 = pneg %p540
      $region62: #{tpu_custom_call.1} parent=5 // pred_check_branch
        %543 = sbr.rel (%p541) target = $region64
      $region63: #{tpu_custom_call.1} parent=5 // pred_region
        %s544 = ssub.s32 %s18, 2
        // Predicated region
        $region65: #{tpu_custom_call.1} parent=63 // pred_check
          %p545 = pneg %p171
        $region66: #{tpu_custom_call.1} parent=63 // pred_check_branch
          %547 = sbr.rel (%p545) target = $region68
        $region67: #{tpu_custom_call.1} parent=63 // pred_region
          %s548 = sand.u32 %s156, 1
          %s549 = scalar_lea.sflag [#allocation5], %s548
          %s550 = sand.u32 %s156, 1
          %s551 = scalar_lea.vmem [#allocation8], %s550
          %552 = dma.done %s549, 16
        $region68: #{tpu_custom_call.1} parent=63 // pred_fallthru
          _
      $region64: #{tpu_custom_call.1} parent=5 // pred_fallthru
        _
    $region6: #{tpu_custom_call.1} parent=1 // loop_footer
      %s22 = sadd.s32 1, %s18
    $region7: #{tpu_custom_call.1} parent=1 // loop_footer_branch
      %17 = sbr.rel target = $region3
    $region8: #{tpu_custom_call.1} parent=1 // loop_exit
      _
    %553 = vsyncpa [#allocation4], 1
    %s554 = scalar_lea.sflag [#allocation4], 1
    %555 = vsyncpa %s554, 1
    %556 = vsyncpa [#allocation7], 1
    %557 = vsyncpa [#allocation5], 1
    %s558 = scalar_lea.sflag [#allocation5], 1
    %559 = vsyncpa %s558, 1

</llo_original>
